<compile_context>
chip_gen: v7x
topology: tpu7x:2x2x1
jax: 0.10.0
libtpu: 0.0.40
codegen_flags: <defaults>
</compile_context>

<pallas_src>
import functools

import jax
import jax.numpy as jnp
from jax.experimental import pallas as pl
from jax.experimental.pallas import tpu as pltpu


def _gemv_kernel(x_ref, w_ref, o_ref, acc_ref, *, d_total, tk):
    # x_ref: (tb, tk) batch tile, w_ref: (1, tk), o_ref: (1, tb) lane-dense,
    # acc_ref: (1, tb) f32 accumulator resident across the K grid axis.
    k = pl.program_id(1)

    @pl.when(k == 0)
    def _():
        acc_ref[...] = jnp.zeros_like(acc_ref)

    xv = x_ref[...]
    wv = w_ref[...]
    if d_total % tk != 0:
        # Static branch: only emitted when the last K block is partial. Zero
        # out the out-of-range columns of BOTH operands so unspecified data in
        # the padded region of the VMEM buffers cannot reach the accumulator.
        col = jax.lax.broadcasted_iota(jnp.int32, (1, tk), 1) + k * tk
        lane_ok = col < d_total
        wv = jnp.where(lane_ok, wv, 0)
        xv = jnp.where(lane_ok, xv, 0)

    # (1, tk) . (tb, tk)^T -> (1, tb), f32 accumulation on the MXU.
    acc_ref[...] += jax.lax.dot_general(
        wv,
        xv,
        dimension_numbers=(((1,), (1,)), ((), ())),
        preferred_element_type=jnp.float32,
    )

    @pl.when(k == pl.num_programs(1) - 1)
    def _():
        o_ref[...] = acc_ref[...].astype(o_ref.dtype)


def _linear_forward_pallas(x, w, *, per_buffer_bytes=12 * 1024 * 1024,
                           vmem_limit_bytes=48 * 1024 * 1024):
    """x: (B, D); w: (1, D). Returns (B, 1) = x @ w.T via a Pallas GEMV."""
    B, D = x.shape
    assert w.shape == (1, D)
    dtype_bytes = jnp.dtype(x.dtype).itemsize

    # --- Tile sizing: bytes-capped, no row cap. -----------------------------
    rows_budget = per_buffer_bytes // max(1, D * dtype_bytes)
    if rows_budget >= 128:
        # A full-D x block fits the per-buffer budget: no K split.
        tk = D
        tb = (rows_budget // 128) * 128
    else:
        # D too large for a 128-row full-D block: split the reduction axis.
        tb = 128
        tk_budget = per_buffer_bytes // (tb * dtype_bytes)
        tk = max(128, (tk_budget // 128) * 128)
        tk = min(tk, pl.cdiv(D, 128) * 128)

    # Don't exceed the (128-rounded) batch.
    tb = min(tb, pl.cdiv(B, 128) * 128)
    # v7x megacore: ensure >= 2 batch tiles (roughly even) when B allows it so
    # both TensorCores get work via the "parallel" batch axis.
    b128 = pl.cdiv(B, 128)
    if b128 >= 2:
        tb = min(tb, pl.cdiv(b128, 2) * 128)
    tb = max(tb, 128)

    num_b = pl.cdiv(B, tb)
    num_k = pl.cdiv(D, tk)

    kernel = functools.partial(_gemv_kernel, d_total=D, tk=tk)

    out = pl.pallas_call(
        kernel,
        out_shape=jax.ShapeDtypeStruct((1, B), x.dtype),
        grid_spec=pl.GridSpec(
            grid=(num_b, num_k),
            in_specs=[
                # x: streamed (tb, tk) tiles, double-buffered by Pallas.
                pl.BlockSpec((tb, tk), lambda i, k: (i, k)),
                # w: (1, tk) — constant in i, so resident when num_k == 1.
                pl.BlockSpec((1, tk), lambda i, k: (0, k)),
            ],
            # Lane-dense output slab; same block across k -> accumulator tile.
            out_specs=pl.BlockSpec((1, tb), lambda i, k: (0, i)),
            scratch_shapes=[pltpu.VMEM((1, tb), jnp.float32)],
        ),
        compiler_params=pltpu.CompilerParams(
            dimension_semantics=("parallel", "arbitrary"),
            vmem_limit_bytes=vmem_limit_bytes,
        ),
        cost_estimate=pl.CostEstimate(
            flops=2 * B * D,
            transcendentals=0,
            bytes_accessed=dtype_bytes * (B * D + num_b * D + B),
        ),
    )(x, w)

    return out[0, :].reshape(B, 1)


def linear_forward(x, w, *, force_pallas=False):
    """Public wrapper: small-problem fast path (plain JAX) unless forced."""
    B, D = x.shape
    small = B * D * jnp.dtype(x.dtype).itemsize < (2 << 20)  # < 2 MiB of x
    if small and not force_pallas:
        return x @ w.T
    return _linear_forward_pallas(x, w)


if __name__ == "__main__":
    key = jax.random.PRNGKey(0)
    kx, kw, kx2 = jax.random.split(key, 3)

    # --- Small demo shape consistent with the module (dim=32, batch=8). -----
    dim, batch = 32, 8
    x = jax.random.normal(kx, (batch, dim), dtype=jnp.float32)
    bound = 1.0 / (dim ** 0.5)
    w = jax.random.uniform(kw, (1, dim), dtype=jnp.float32, minval=-bound, maxval=bound)

    y = jax.block_until_ready(linear_forward(x, w, force_pallas=True))  # Pallas path
    y_ref = x @ w.T
    assert y.shape == (batch, 1)
    assert jnp.allclose(y, y_ref, atol=1e-4, rtol=1e-4)

    # Default wrapper (fast path for tiny shapes) must agree too.
    y_fast = jax.block_until_ready(linear_forward(x, w))
    assert jnp.allclose(y_fast, y_ref, atol=1e-4, rtol=1e-4)

    # --- Exercise partial batch blocks, multi-tile batch, K split + masking --
    B2, D2 = 300, 200
    x2 = jax.random.normal(kx2, (B2, D2), dtype=jnp.float32)
    bound2 = 1.0 / (D2 ** 0.5)
    w2 = jax.random.uniform(kw, (1, D2), dtype=jnp.float32, minval=-bound2, maxval=bound2)
    # Tiny per-buffer budget forces the K-split / accumulator / masking path.
    y2 = jax.block_until_ready(
        _linear_forward_pallas(x2, w2, per_buffer_bytes=64 * 1024))
    y2_ref = x2 @ w2.T
    assert y2.shape == (B2, 1)
    assert jnp.allclose(y2, y2_ref, atol=1e-4, rtol=1e-4)

    print("KERNEL_OK")
</pallas_src>

<mosaic_0001>
module attributes {stable_mosaic.version = 11 : i64} {
  func.func @_gemv_kernel(%arg0: i32, %arg1: i32, %arg2: memref<128x32xf32, #tpu.memory_space<vmem>>, %arg3: memref<1x32xf32, #tpu.memory_space<vmem>>, %arg4: memref<1x128xf32, #tpu.memory_space<vmem>>, %arg5: memref<1x128xf32, #tpu.memory_space<vmem>>) attributes {dimension_semantics = [#tpu.dimension_semantics<parallel>, #tpu.dimension_semantics<arbitrary>], iteration_bounds = array<i64: 1, 1>, scalar_prefetch = 0 : i64, scratch_operands = 1 : i64, tpu.core_type = #tpu.core_type<tc>, window_params = [{transform_indices = @transform_0, window_bounds = array<i64: 128, 32>}, {transform_indices = @transform_1, window_bounds = array<i64: 1, 32>}, {transform_indices = @transform_2, window_bounds = array<i64: 1, 128>}]} {
    %c0_i32 = arith.constant 0 : i32
    %0 = arith.cmpi eq, %arg1, %c0_i32 : i32
    %1 = arith.extui %0 : i1 to i32
    %c0_i32_0 = arith.constant 0 : i32
    %2 = arith.cmpi ne, %1, %c0_i32_0 : i32
    scf.if %2 {
      %cst_10 = arith.constant 0.000000e+00 : f32
      %12 = vector.broadcast %cst_10 : f32 to vector<1x128xf32>
      %c0_11 = arith.constant 0 : index
      %c0_12 = arith.constant 0 : index
      %13 = vector.load %arg5[%c0_11, %c0_12] : memref<1x128xf32, #tpu.memory_space<vmem>>, vector<1x128xf32>
      tpu.vector_store %arg5[%c0_11, %c0_12], %12 {strides = array<i32>} : memref<1x128xf32, #tpu.memory_space<vmem>>, vector<1x128xf32>,
    } else {
    }
    %c0 = arith.constant 0 : index
    %c0_1 = arith.constant 0 : index
    %3 = vector.load %arg2[%c0, %c0_1] : memref<128x32xf32, #tpu.memory_space<vmem>>, vector<128x32xf32>
    %c0_2 = arith.constant 0 : index
    %c0_3 = arith.constant 0 : index
    %4 = vector.load %arg3[%c0_2, %c0_3] : memref<1x32xf32, #tpu.memory_space<vmem>>, vector<1x32xf32>
    %c0_4 = arith.constant 0 : index
    %c0_5 = arith.constant 0 : index
    %5 = vector.load %arg5[%c0_4, %c0_5] : memref<1x128xf32, #tpu.memory_space<vmem>>, vector<1x128xf32>
    %cst = arith.constant dense<0.000000e+00> : vector<1x128xf32>
    %6 = tpu.matmul %4, %3, %cst {dimension_numbers = #tpu.dot_dimension_numbers<[1], [1], [0], [0], [0, 0, 1, 0], [], []>} : vector<1x32xf32>, vector<128x32xf32>, vector<1x128xf32> -> vector<1x128xf32>
    %7 = arith.addf %5, %6 : vector<1x128xf32>
    %c0_6 = arith.constant 0 : index
    %c0_7 = arith.constant 0 : index
    %8 = vector.load %arg5[%c0_6, %c0_7] : memref<1x128xf32, #tpu.memory_space<vmem>>, vector<1x128xf32>
    tpu.vector_store %arg5[%c0_6, %c0_7], %7 {strides = array<i32>} : memref<1x128xf32, #tpu.memory_space<vmem>>, vector<1x128xf32>,
    %c0_i32_8 = arith.constant 0 : i32
    %9 = arith.cmpi eq, %arg1, %c0_i32_8 : i32
    %10 = arith.extui %9 : i1 to i32
    %c0_i32_9 = arith.constant 0 : i32
    %11 = arith.cmpi ne, %10, %c0_i32_9 : i32
    scf.if %11 {
      %c0_10 = arith.constant 0 : index
      %c0_11 = arith.constant 0 : index
      %12 = vector.load %arg5[%c0_10, %c0_11] : memref<1x128xf32, #tpu.memory_space<vmem>>, vector<1x128xf32>
      %c0_12 = arith.constant 0 : index
      %c0_13 = arith.constant 0 : index
      %13 = vector.load %arg4[%c0_12, %c0_13] : memref<1x128xf32, #tpu.memory_space<vmem>>, vector<1x128xf32>
      tpu.vector_store %arg4[%c0_12, %c0_13], %12 {strides = array<i32>} : memref<1x128xf32, #tpu.memory_space<vmem>>, vector<1x128xf32>,
    } else {
    }
    return
  }
  func.func @transform_0(%arg0: i32, %arg1: i32) -> (i32, i32) {
    %c0_i32 = arith.constant 0 : i32
    return %arg0, %arg1 : i32, i32
  }
  func.func @transform_1(%arg0: i32, %arg1: i32) -> (i32, i32) {
    %c0_i32 = arith.constant 0 : i32
    %c0_i32_0 = arith.constant 0 : i32
    return %c0_i32, %arg1 : i32, i32
  }
  func.func @transform_2(%arg0: i32, %arg1: i32) -> (i32, i32) {
    %c0_i32 = arith.constant 0 : i32
    %c0_i32_0 = arith.constant 0 : i32
    return %c0_i32, %arg0 : i32, i32
  }
}

</mosaic_0001>

<llo_original>
// kernel: tpu_custom_call.1
$region0: #{tpu_custom_call.1}
  #allocation0 [shape = 'u32[]', space=smem, size = 0x4, offset = 0x4, fixed_abs, tag = 'smem constant byte address 0x4 - core index']
  #allocation1 [shape = 'u32[144,128]{1,0:T(1,128)}', space=vmem, size = 0x12000, scoped, tag = 'internal scratch']
  #allocation2 [shape = 'f32[1,128]{1,0:T(1,128)}', space=vmem, size = 0x200, scoped, tag = 'scratch operand']
  %s0 = inlined_call_operand.hbm [shape: f32[8,32], index: 0, kind: input, shape index: {}]
  %s1 = inlined_call_operand.vmem [shape: f32[1,32], index: 1, kind: input, shape index: {}]
  %s2 = inlined_call_operand.hbm [shape: f32[1,8], index: 2, kind: output, shape index: {}]
  %s3 = sld [smem:[#allocation0]]
  $region30: #{tpu_custom_call.1} parent=0
    _
  %s5 = ssub.s32 1, %s3
  %s6 = scalar_select 0, %s5, %s3
  $region1: #{tpu_custom_call.1} parent=0
    #allocation3 [shape = 'u8[65536]{0}', space=vmem, size = 0x10000, scoped, tag = 'input window, operand 0, single buffered']
    #allocation4 [shape = 's32[1]{0}', space=sflag, size = 0x4, scoped, tag = 'scoped memory for tpu_custom_call.1']
    #allocation5 [shape = 's32[1]{0}', space=sflag, size = 0x4, scoped, tag = 'scoped memory for tpu_custom_call.1']
    #allocation6 [shape = 'u8[512]{0}', space=vmem, size = 0x400, scoped, tag = 'output window, operand 0, single buffered']
    %7 = vsyncpa [#allocation4], 0
    %8 = vsyncpa [#allocation5], 0
    // Predicated region
    $region2: #{tpu_custom_call.1} parent=1 // pred_check
      _
    $region3: #{tpu_custom_call.1} parent=1 // pred_check_branch
      %10 = sbr.rel (0) target = $region5
    $region4: #{tpu_custom_call.1} parent=1 // pred_region
      %s12 = ssub.s32 2048, 128
      %13 = vsyncadd [#allocation4], %s12
      %s14 = sshll.u32 [#allocation3], 4
      %s15 = int_to_ptr.vmem [resolvable:$true] %s14
      %20 = dma.hbm_to_vmem [thread:$0]  %s0, 128, %s15, [#allocation4], 128, 128, 8
    $region5: #{tpu_custom_call.1} parent=1 // pred_fallthru
      _
    // Predicated region
    $region6: #{tpu_custom_call.1} parent=1 // pred_check
      _
    $region7: #{tpu_custom_call.1} parent=1 // pred_check_branch
      %22 = sbr.rel (0) target = $region9
    $region8: #{tpu_custom_call.1} parent=1 // pred_region
      _
    $region9: #{tpu_custom_call.1} parent=1 // pred_fallthru
      _
    // Predicated region
    $region10: #{tpu_custom_call.1} parent=1 // pred_check
      _
    $region11: #{tpu_custom_call.1} parent=1 // pred_check_branch
      %24 = sbr.rel (0) target = $region13
    $region12: #{tpu_custom_call.1} parent=1 // pred_region
      %25 = dma.done [#allocation4], 2048
    $region13: #{tpu_custom_call.1} parent=1 // pred_fallthru
      _
    %p26 = scmp.eq.s32.totalorder 0, 0
    // Predicated region
    $region14: #{tpu_custom_call.1} parent=1 // pred_check
      %p27 = pneg %p26
    $region15: #{tpu_custom_call.1} parent=1 // pred_check_branch
      %29 = sbr.rel (%p27) target = $region17
    $region16: #{tpu_custom_call.1} parent=1 // pred_region
      %30 = vst [vmem:[#allocation2] sm:$0x1] 0.0
    $region17: #{tpu_custom_call.1} parent=1 // pred_fallthru
      _
    %v31 = vld [vmem:[#allocation3] sm:$0xff]
    %v32 = vld [vmem:[#allocation3 + $0x8] sm:$0xff]
    %v33 = vld [vmem:[#allocation3 + $0x10] sm:$0xff]
    %v34 = vld [vmem:[#allocation3 + $0x18] sm:$0xff]
    %v35 = vld [vmem:[#allocation3 + $0x20] sm:$0xff]
    %v36 = vld [vmem:[#allocation3 + $0x28] sm:$0xff]
    %v37 = vld [vmem:[#allocation3 + $0x30] sm:$0xff]
    %v38 = vld [vmem:[#allocation3 + $0x38] sm:$0xff]
    %v39 = vld [vmem:[#allocation3 + $0x40] sm:$0xff]
    %v40 = vld [vmem:[#allocation3 + $0x48] sm:$0xff]
    %v41 = vld [vmem:[#allocation3 + $0x50] sm:$0xff]
    %v42 = vld [vmem:[#allocation3 + $0x58] sm:$0xff]
    %v43 = vld [vmem:[#allocation3 + $0x60] sm:$0xff]
    %v44 = vld [vmem:[#allocation3 + $0x68] sm:$0xff]
    %v45 = vld [vmem:[#allocation3 + $0x70] sm:$0xff]
    %v46 = vld [vmem:[#allocation3 + $0x78] sm:$0xff]
    %v47 = vld [vmem:[%s1] sm:$0x1]
    %v48 = vld [vmem:[#allocation2] sm:$0x1]
    %vm49 = vcmask 261120
    %v51 = vsel %vm49, %v47, 0
    %v54 = vsel %vm49, %v31, 0
    %v57 = vsel %vm49, %v32, 0
    %v60 = vsel %vm49, %v33, 0
    %v63 = vsel %vm49, %v34, 0
    %v66 = vsel %vm49, %v35, 0
    %v69 = vsel %vm49, %v36, 0
    %v72 = vsel %vm49, %v37, 0
    %v75 = vsel %vm49, %v38, 0
    %v78 = vsel %vm49, %v39, 0
    %v81 = vsel %vm49, %v40, 0
    %v84 = vsel %vm49, %v41, 0
    %v87 = vsel %vm49, %v42, 0
    %v90 = vsel %vm49, %v43, 0
    %v93 = vsel %vm49, %v44, 0
    %v96 = vsel %vm49, %v45, 0
    %v99 = vsel %vm49, %v46, 0
    %101 = vmatprep.subr.mxu0 0.0
    %102 = vmatpush1.xpose.msra.mxu0 %v54
    %103 = vmatprep.subr.mxu0 0.0
    %104 = vmatpush1.xpose.msra.mxu0 %v57
    %105 = vmatprep.subr.mxu0 0.0
    %106 = vmatpush1.xpose.msra.mxu0 %v60
    %107 = vmatprep.subr.mxu0 0.0
    %108 = vmatpush1.xpose.msra.mxu0 %v63
    %109 = vmatprep.subr.mxu0 0.0
    %110 = vmatpush1.xpose.msra.mxu0 %v66
    %111 = vmatprep.subr.mxu0 0.0
    %112 = vmatpush1.xpose.msra.mxu0 %v69
    %113 = vmatprep.subr.mxu0 0.0
    %114 = vmatpush1.xpose.msra.mxu0 %v72
    %115 = vmatprep.subr.mxu0 0.0
    %116 = vmatpush1.xpose.msra.mxu0 %v75
    %117 = vmatprep.subr.mxu0 0.0
    %118 = vmatpush1.xpose.msra.mxu0 %v78
    %119 = vmatprep.subr.mxu0 0.0
    %120 = vmatpush1.xpose.msra.mxu0 %v81
    %121 = vmatprep.subr.mxu0 0.0
    %122 = vmatpush1.xpose.msra.mxu0 %v84
    %123 = vmatprep.subr.mxu0 0.0
    %124 = vmatpush1.xpose.msra.mxu0 %v87
    %125 = vmatprep.subr.mxu0 0.0
    %126 = vmatpush1.xpose.msra.mxu0 %v90
    %127 = vmatprep.subr.mxu0 0.0
    %128 = vmatpush1.xpose.msra.mxu0 %v93
    %129 = vmatprep.subr.mxu0 0.0
    %130 = vmatpush1.xpose.msra.mxu0 %v96
    %131 = vmatprep.subr.mxu0 0.0
    %132 = vmatpush1.xpose.msra.mxu0 %v99
    %133 = vmatprep.subr.mxu0 0.0
    %134 = vmatpush1.xpose.msra.mxu0 0.0
    %135 = vmatprep.subr.mxu0 0.0
    %136 = vmatpush1.xpose.msra.mxu0 0.0
    %137 = vmatprep.subr.mxu0 0.0
    %138 = vmatpush1.xpose.msra.mxu0 0.0
    %139 = vmatprep.subr.mxu0 0.0
    %140 = vmatpush1.xpose.msra.mxu0 0.0
    %141 = vmatprep.subr.mxu0 0.0
    %142 = vmatpush1.xpose.msra.mxu0 0.0
    %143 = vmatprep.subr.mxu0 0.0
    %144 = vmatpush1.xpose.msra.mxu0 0.0
    %145 = vmatprep.subr.mxu0 0.0
    %146 = vmatpush1.xpose.msra.mxu0 0.0
    %147 = vmatprep.subr.mxu0 0.0
    %148 = vmatpush1.xpose.msra.mxu0 0.0
    %149 = vmatprep.subr.mxu0 0.0
    %150 = vmatpush1.xpose.msra.mxu0 0.0
    %151 = vmatprep.subr.mxu0 0.0
    %152 = vmatpush1.xpose.msra.mxu0 0.0
    %153 = vmatprep.subr.mxu0 0.0
    %154 = vmatpush1.xpose.msra.mxu0 0.0
    %155 = vmatprep.subr.mxu0 0.0
    %156 = vmatpush1.xpose.msra.mxu0 0.0
    %157 = vmatprep.subr.mxu0 0.0
    %158 = vmatpush1.xpose.msra.mxu0 0.0
    %159 = vmatprep.subr.mxu0 0.0
    %160 = vmatpush1.xpose.msra.mxu0 0.0
    %161 = vmatprep.subr.mxu0 0.0
    %162 = vmatpush1.xpose.msra.mxu0 0.0
    %163 = vmatprep.subr.mxu0 0.0
    %164 = vmatpush1.xpose.msra.mxu0 0.0
    %165 = vmatprep.mubr.f32.mxu0 0.0
    %166 = vmatmul.mubr.f32.gmra.mrb[0].mxu0 %v51
    %v167 = vpop.f32.mrb[0].mxu0
    %v168 = vadd.f32 0.0, %v167
    %v169 = vpop.f32.mrb[0].mxu0
    %170 = vdwg.mxu0
    %v171 = vadd.f32 %v48, %v168
    %172 = vst [vmem:[#allocation2] sm:$0x1] %v171
    // Predicated region
    $region18: #{tpu_custom_call.1} parent=1 // pred_check
      %p173 = pneg %p26
    $region19: #{tpu_custom_call.1} parent=1 // pred_check_branch
      %175 = sbr.rel (%p173) target = $region21
    $region20: #{tpu_custom_call.1} parent=1 // pred_region
      %v176 = vld [vmem:[#allocation2] sm:$0x1]
      %177 = vst [vmem:[#allocation6] sm:$0x1] %v176
    $region21: #{tpu_custom_call.1} parent=1 // pred_fallthru
      _
    // Predicated region
    $region22: #{tpu_custom_call.1} parent=1 // pred_check
      _
    $region23: #{tpu_custom_call.1} parent=1 // pred_check_branch
      %179 = sbr.rel (0) target = $region25
    $region24: #{tpu_custom_call.1} parent=1 // pred_region
      %s181 = ssub.s32 16, 16
      %182 = vsyncadd [#allocation5], %s181
      %s184 = sshll.u32 [#allocation6], 4
      %s185 = int_to_ptr.vmem [resolvable:$true] %s184
      %187 = dma.vmem_to_hbm [thread:$0]  %s185, 16, %s2, [#allocation5]
    $region25: #{tpu_custom_call.1} parent=1 // pred_fallthru
      _
    // Predicated region
    $region26: #{tpu_custom_call.1} parent=1 // pred_check
      _
    $region27: #{tpu_custom_call.1} parent=1 // pred_check_branch
      %189 = sbr.rel (0) target = $region29
    $region28: #{tpu_custom_call.1} parent=1 // pred_region
      %190 = dma.done [#allocation5], 16
    $region29: #{tpu_custom_call.1} parent=1 // pred_fallthru
      _
    %191 = vsyncpa [#allocation4], 1
    %192 = vsyncpa [#allocation5], 1

</llo_original>
